<compile_context>
chip_gen: v7x
topology: tpu7x:2x2x1
jax: 0.10.0
libtpu: 0.0.40
codegen_flags: <defaults>
</compile_context>

<pallas_src>
import functools

import jax
import jax.numpy as jnp
from jax.experimental import pallas as pl
from jax.experimental.pallas import tpu as pltpu

LANES = 128
SUBLANES = 8
MAX_TILE_ROWS = 512  # 512*128*f32 = 256 KiB per operand tile -> comfortably in VMEM


# ------------------------------ kernels --------------------------------------
def _mape_mean_kernel(p_ref, t_ref, o_ref, acc_n, *, eps, inv_count):
    """Unweighted MAPE: accumulate ape elementwise, reduce + scale at the end."""
    i = pl.program_id(0)

    @pl.when(i == 0)
    def _():
        acc_n[...] = jnp.zeros_like(acc_n)

    p = p_ref[...]
    t = t_ref[...]
    ape = jnp.abs(p - t) / (jnp.abs(t) + eps)
    acc_n[...] += ape                       # padded elements contribute exactly 0

    @pl.when(i == pl.num_programs(0) - 1)
    def _():
        num = jnp.sum(jnp.sum(acc_n[...], axis=1, keepdims=True),
                      axis=0, keepdims=True)            # (1, 1)
        o_ref[...] = num * inv_count


def _mape_weighted_kernel(p_ref, t_ref, w_ref, o_ref, acc_n, acc_d, *, eps):
    """Weighted MAPE: accumulate ape*w and w, divide once at the end."""
    i = pl.program_id(0)

    @pl.when(i == 0)
    def _():
        acc_n[...] = jnp.zeros_like(acc_n)
        acc_d[...] = jnp.zeros_like(acc_d)

    p = p_ref[...]
    t = t_ref[...]
    w = w_ref[...]
    ape = jnp.abs(p - t) / (jnp.abs(t) + eps)
    acc_n[...] += ape * w                   # padded weight == 0 -> contributes 0
    acc_d[...] += w

    @pl.when(i == pl.num_programs(0) - 1)
    def _():
        num = jnp.sum(jnp.sum(acc_n[...], axis=1, keepdims=True),
                      axis=0, keepdims=True)            # (1, 1)
        den = jnp.sum(jnp.sum(acc_d[...], axis=1, keepdims=True),
                      axis=0, keepdims=True)            # (1, 1)
        o_ref[...] = num / den


# ------------------------------ wrapper ---------------------------------------
def _to_lane_tiles(x, rows_target=None):
    """Flatten -> f32 -> zero-pad -> reshape to (rows, 128), rows % 8 == 0."""
    flat = jnp.ravel(x).astype(jnp.float32)
    n = flat.shape[0]
    rows = max(SUBLANES, -(-n // LANES))
    rows = -(-rows // SUBLANES) * SUBLANES
    if rows_target is not None:
        rows = rows_target
    padded = rows * LANES
    if padded != n:
        flat = jnp.pad(flat, (0, padded - n))
    return flat.reshape(rows, LANES), n, rows


@functools.partial(jax.jit, static_argnames=("eps",))
def mape(pred, target, weight=None, eps=1e-8):
    """MAPE loss matching the PyTorch reference; returns a scalar (0-d f32)."""
    p2, n, rows = _to_lane_tiles(pred)
    t2, _, _ = _to_lane_tiles(target, rows_target=rows)

    # Pick a lane-dense row tile and make the row count divide evenly.
    tile_rows = min(rows, MAX_TILE_ROWS)
    rows_p = -(-rows // tile_rows) * tile_rows
    if rows_p != rows:
        rpad = ((0, rows_p - rows), (0, 0))
        p2 = jnp.pad(p2, rpad)
        t2 = jnp.pad(t2, rpad)
    grid = (rows_p // tile_rows,)

    tile_spec = pl.BlockSpec((tile_rows, LANES), lambda i: (i, 0))
    out_spec = pl.BlockSpec((1, 1), lambda i: (0, 0))
    out_shape = jax.ShapeDtypeStruct((1, 1), jnp.float32)
    cparams = pltpu.CompilerParams(dimension_semantics=("arbitrary",))

    if weight is None:
        out = pl.pallas_call(
            functools.partial(_mape_mean_kernel, eps=eps, inv_count=1.0 / n),
            out_shape=out_shape,
            grid=grid,
            in_specs=[tile_spec, tile_spec],
            out_specs=out_spec,
            scratch_shapes=[pltpu.VMEM((tile_rows, LANES), jnp.float32)],
            compiler_params=cparams,
        )(p2, t2)
    else:
        # TODO(synk): a weight with a different (broadcastable) shape than pred
        # is normalized by the broadcast weight sum here, whereas torch uses the
        # un-broadcast weight.sum(); identical when weight.shape == pred.shape.
        w_b = jnp.broadcast_to(weight, pred.shape)
        w2, _, w_rows = _to_lane_tiles(w_b, rows_target=rows)
        if rows_p != w_rows:
            w2 = jnp.pad(w2, ((0, rows_p - w_rows), (0, 0)))
        out = pl.pallas_call(
            functools.partial(_mape_weighted_kernel, eps=eps),
            out_shape=out_shape,
            grid=grid,
            in_specs=[tile_spec, tile_spec, tile_spec],
            out_specs=out_spec,
            scratch_shapes=[pltpu.VMEM((tile_rows, LANES), jnp.float32),
                            pltpu.VMEM((tile_rows, LANES), jnp.float32)],
            compiler_params=cparams,
        )(p2, t2, w2)

    return out[0, 0]


# ------------------------------- main ------------------------------------------
if __name__ == "__main__":
    eps = 1e-8
    key = jax.random.PRNGKey(0)
    k1, k2, k3, k4, k5 = jax.random.split(key, 5)

    # Case 1: lane-aligned input, both unweighted and weighted paths.
    pred = jax.random.normal(k1, (4, 256), jnp.float32)
    target = jax.random.normal(k2, (4, 256), jnp.float32) + 1.0
    weight = jnp.abs(jax.random.normal(k3, (4, 256), jnp.float32)) + 0.1

    out_u = mape(pred, target)
    out_w = mape(pred, target, weight)

    # Case 2: ragged shape that exercises the zero-padding path.
    pred2 = jax.random.normal(k4, (2, 37, 5), jnp.float32)
    target2 = jax.random.normal(k5, (2, 37, 5), jnp.float32) + 0.5
    out_u2 = mape(pred2, target2)

    jax.block_until_ready((out_u, out_w, out_u2))

    # Pure-JAX reference (mirrors the PyTorch module).
    ape = jnp.abs(pred - target) / (jnp.abs(target) + eps)
    ref_u = jnp.mean(ape)
    ref_w = jnp.sum(ape * weight / jnp.sum(weight))
    ape2 = jnp.abs(pred2 - target2) / (jnp.abs(target2) + eps)
    ref_u2 = jnp.mean(ape2)

    assert out_u.shape == () and out_w.shape == () and out_u2.shape == ()
    assert bool(jnp.allclose(out_u, ref_u, rtol=1e-5, atol=1e-6)), (out_u, ref_u)
    assert bool(jnp.allclose(out_w, ref_w, rtol=1e-5, atol=1e-6)), (out_w, ref_w)
    assert bool(jnp.allclose(out_u2, ref_u2, rtol=1e-5, atol=1e-6)), (out_u2, ref_u2)
    assert bool(jnp.isfinite(out_u)) and bool(jnp.isfinite(out_w))
    print("KERNEL_OK")
</pallas_src>

<mosaic_0001>
module attributes {stable_mosaic.version = 11 : i64} {
  func.func @_mape_mean_kernel(%arg0: i32, %arg1: memref<8x128xf32, #tpu.memory_space<vmem>>, %arg2: memref<8x128xf32, #tpu.memory_space<vmem>>, %arg3: memref<1x1xf32, #tpu.memory_space<vmem>>, %arg4: memref<8x128xf32, #tpu.memory_space<vmem>>) attributes {dimension_semantics = [#tpu.dimension_semantics<arbitrary>], iteration_bounds = array<i64: 1>, scalar_prefetch = 0 : i64, scratch_operands = 1 : i64, tpu.core_type = #tpu.core_type<tc>, window_params = [{transform_indices = @transform_0, window_bounds = array<i64: 8, 128>}, {transform_indices = @transform_1, window_bounds = array<i64: 8, 128>}, {pipeline_mode = #tpu.pipeline_mode<synchronous>, transform_indices = @transform_2, window_bounds = array<i64: 1, 1>}]} {
    %c0_i32 = arith.constant 0 : i32
    %0 = arith.cmpi eq, %arg0, %c0_i32 : i32
    %1 = arith.extui %0 : i1 to i32
    %c0_i32_0 = arith.constant 0 : i32
    %2 = arith.cmpi ne, %1, %c0_i32_0 : i32
    scf.if %2 {
      %cst_10 = arith.constant 0.000000e+00 : f32
      %17 = vector.broadcast %cst_10 : f32 to vector<8x128xf32>
      %c0_11 = arith.constant 0 : index
      %c0_12 = arith.constant 0 : index
      %18 = vector.load %arg4[%c0_11, %c0_12] : memref<8x128xf32, #tpu.memory_space<vmem>>, vector<8x128xf32>
      tpu.vector_store %arg4[%c0_11, %c0_12], %17 {strides = array<i32>} : memref<8x128xf32, #tpu.memory_space<vmem>>, vector<8x128xf32>,
    } else {
    }
    %c0 = arith.constant 0 : index
    %c0_1 = arith.constant 0 : index
    %3 = vector.load %arg1[%c0, %c0_1] : memref<8x128xf32, #tpu.memory_space<vmem>>, vector<8x128xf32>
    %c0_2 = arith.constant 0 : index
    %c0_3 = arith.constant 0 : index
    %4 = vector.load %arg2[%c0_2, %c0_3] : memref<8x128xf32, #tpu.memory_space<vmem>>, vector<8x128xf32>
    %5 = arith.subf %3, %4 : vector<8x128xf32>
    %6 = math.absf %5 : vector<8x128xf32>
    %7 = math.absf %4 : vector<8x128xf32>
    %cst = arith.constant 9.99999993E-9 : f32
    %8 = vector.broadcast %cst : f32 to vector<8x128xf32>
    %9 = arith.addf %7, %8 : vector<8x128xf32>
    %10 = arith.divf %6, %9 : vector<8x128xf32>
    %c0_4 = arith.constant 0 : index
    %c0_5 = arith.constant 0 : index
    %11 = vector.load %arg4[%c0_4, %c0_5] : memref<8x128xf32, #tpu.memory_space<vmem>>, vector<8x128xf32>
    %12 = arith.addf %11, %10 : vector<8x128xf32>
    %c0_6 = arith.constant 0 : index
    %c0_7 = arith.constant 0 : index
    %13 = vector.load %arg4[%c0_6, %c0_7] : memref<8x128xf32, #tpu.memory_space<vmem>>, vector<8x128xf32>
    tpu.vector_store %arg4[%c0_6, %c0_7], %12 {strides = array<i32>} : memref<8x128xf32, #tpu.memory_space<vmem>>, vector<8x128xf32>,
    %c0_i32_8 = arith.constant 0 : i32
    %14 = arith.cmpi eq, %arg0, %c0_i32_8 : i32
    %15 = arith.extui %14 : i1 to i32
    %c0_i32_9 = arith.constant 0 : i32
    %16 = arith.cmpi ne, %15, %c0_i32_9 : i32
    scf.if %16 {
      %c0_10 = arith.constant 0 : index
      %c0_11 = arith.constant 0 : index
      %17 = vector.load %arg4[%c0_10, %c0_11] : memref<8x128xf32, #tpu.memory_space<vmem>>, vector<8x128xf32>
      %cst_12 = arith.constant dense<0.000000e+00> : vector<8xf32>
      %18 = vector.multi_reduction <add>, %17, %cst_12 [1] : vector<8x128xf32> to vector<8xf32>
      %19 = vector.shape_cast %18 : vector<8xf32> to vector<8x1xf32>
      %cst_13 = arith.constant dense<0.000000e+00> : vector<1xf32>
      %20 = vector.multi_reduction <add>, %19, %cst_13 [0] : vector<8x1xf32> to vector<1xf32>
      %21 = vector.shape_cast %20 : vector<1xf32> to vector<1x1xf32>
      %cst_14 = arith.constant 9.765625E-4 : f32
      %22 = vector.broadcast %cst_14 : f32 to vector<1x1xf32>
      %23 = arith.mulf %21, %22 : vector<1x1xf32>
      %c0_15 = arith.constant 0 : index
      %c0_16 = arith.constant 0 : index
      %24 = vector.load %arg3[%c0_15, %c0_16] : memref<1x1xf32, #tpu.memory_space<vmem>>, vector<1x1xf32>
      tpu.vector_store %arg3[%c0_15, %c0_16], %23 {strides = array<i32>} : memref<1x1xf32, #tpu.memory_space<vmem>>, vector<1x1xf32>,
    } else {
    }
    return
  }
  func.func @transform_0(%arg0: i32) -> (i32, i32) {
    %c0_i32 = arith.constant 0 : i32
    %c0_i32_0 = arith.constant 0 : i32
    return %arg0, %c0_i32 : i32, i32
  }
  func.func @transform_1(%arg0: i32) -> (i32, i32) {
    %c0_i32 = arith.constant 0 : i32
    %c0_i32_0 = arith.constant 0 : i32
    return %arg0, %c0_i32 : i32, i32
  }
  func.func @transform_2(%arg0: i32) -> (i32, i32) {
    %c0_i32 = arith.constant 0 : i32
    %c0_i32_0 = arith.constant 0 : i32
    %c0_i32_1 = arith.constant 0 : i32
    return %c0_i32, %c0_i32_0 : i32, i32
  }
}

</mosaic_0001>

<llo_original>
// kernel: mape.1
$region0: #{mape.1}
  #allocation0 [shape = 'u32[]', space=smem, size = 0x4, offset = 0x4, fixed_abs, tag = 'smem constant byte address 0x4 - core index']
  #allocation1 [shape = 'u32[144,128]{1,0:T(1,128)}', space=vmem, size = 0x12000, scoped, tag = 'internal scratch']
  #allocation2 [shape = 'f32[8,128]{1,0:T(8,128)}', space=vmem, size = 0x1000, scoped, tag = 'scratch operand']
  %s0 = inlined_call_operand.vmem [shape: f32[8,128], index: 0, kind: input, shape index: {}]
  %s1 = inlined_call_operand.vmem [shape: f32[8,128], index: 1, kind: input, shape index: {}]
  %s2 = inlined_call_operand.hbm [shape: f32[1,1], index: 2, kind: output, shape index: {}]
  %s3 = sld [smem:[#allocation0]]
  $region26: #{mape.1} parent=0
    _
  %s5 = ssub.s32 1, %s3
  %s6 = scalar_select 0, %s5, %s3
  $region1: #{mape.1} parent=0
    #allocation3 [shape = 'u8[512]{0}', space=vmem, size = 0x400, scoped, tag = 'output window, operand 0, single buffered']
    #allocation4 [shape = 's32[1]{0}', space=sflag, size = 0x4, scoped, tag = 'scoped memory for mape.1']
    %7 = vsyncpa [#allocation4], 0
    // Predicated region
    $region2: #{mape.1} parent=1 // pred_check
      _
    $region3: #{mape.1} parent=1 // pred_check_branch
      %9 = sbr.rel (0) target = $region5
    $region4: #{mape.1} parent=1 // pred_region
      _
    $region5: #{mape.1} parent=1 // pred_fallthru
      _
    // Predicated region
    $region6: #{mape.1} parent=1 // pred_check
      _
    $region7: #{mape.1} parent=1 // pred_check_branch
      %11 = sbr.rel (0) target = $region9
    $region8: #{mape.1} parent=1 // pred_region
      _
    $region9: #{mape.1} parent=1 // pred_fallthru
      _
    %p12 = scmp.eq.s32.totalorder 0, 0
    // Predicated region
    $region10: #{mape.1} parent=1 // pred_check
      %p13 = pneg %p12
    $region11: #{mape.1} parent=1 // pred_check_branch
      %15 = sbr.rel (%p13) target = $region13
    $region12: #{mape.1} parent=1 // pred_region
      %16 = vst [vmem:[#allocation2] sm:$0xff] 0.0
    $region13: #{mape.1} parent=1 // pred_fallthru
      _
    %v17 = vld [vmem:[%s0] sm:$0xff]
    %v18 = vld [vmem:[%s1] sm:$0xff]
    %v19 = vsub.f32 %v17, %v18
    %v20 = vand.u32 2147483647, %v19
    %v21 = vand.u32 2147483647, %v18
    %v22 = vadd.f32 %v21, 1e-08
    %v23 = vrcp.pop %v22
    %v24 = vmul.f32 %v20, %v23
    %v25 = vld [vmem:[#allocation2] sm:$0xff]
    %v26 = vadd.f32 %v25, %v24
    %27 = vst [vmem:[#allocation2] sm:$0xff] %v26
    // Predicated region
    $region14: #{mape.1} parent=1 // pred_check
      %p28 = pneg %p12
    $region15: #{mape.1} parent=1 // pred_check_branch
      %30 = sbr.rel (%p28) target = $region17
    $region16: #{mape.1} parent=1 // pred_region
      %v31 = vld [vmem:[#allocation2] sm:$0xff]
      %32 = vadd.xlane.f32.xlu0 %v31
      %v33 = vpop.xlane.xlu0 %32
      %v34 = vrot.slane %v33, 4
      %v35 = vadd.f32 %v33, %v34
      %v36 = vrot.slane %v35, 2
      %v37 = vadd.f32 %v35, %v36
      %v38 = vrot.slane %v37, 1
      %v39 = vadd.f32 %v37, %v38
      %v40 = vmul.f32 %v39, 0.0009765625
      %vm41 = vcmask 0
      %42 = vst.msk [vmem:[#allocation3] sm:$0x1] %vm41, %v40
    $region17: #{mape.1} parent=1 // pred_fallthru
      _
    // Predicated region
    $region18: #{mape.1} parent=1 // pred_check
      _
    $region19: #{mape.1} parent=1 // pred_check_branch
      %44 = sbr.rel (0) target = $region21
    $region20: #{mape.1} parent=1 // pred_region
      %s46 = ssub.s32 16, 16
      %47 = vsyncadd [#allocation4], %s46
      %s49 = sshll.u32 [#allocation3], 4
      %s50 = int_to_ptr.vmem [resolvable:$true] %s49
      %52 = dma.vmem_to_hbm [thread:$0]  %s50, 16, %s2, [#allocation4]
    $region21: #{mape.1} parent=1 // pred_fallthru
      _
    // Predicated region
    $region22: #{mape.1} parent=1 // pred_check
      _
    $region23: #{mape.1} parent=1 // pred_check_branch
      %54 = sbr.rel (0) target = $region25
    $region24: #{mape.1} parent=1 // pred_region
      %55 = dma.done [#allocation4], 16
    $region25: #{mape.1} parent=1 // pred_fallthru
      _
    %56 = vsyncpa [#allocation4], 1

</llo_original>
